<compile_context>
chip_gen: v6e
topology: v6e:2x2x1
jax: 0.10.0
libtpu: 0.0.40
codegen_flags: <defaults>
</compile_context>

<pallas_src>
import functools

import jax
import jax.numpy as jnp
from jax.experimental import pallas as pl
from jax.experimental.pallas import tpu as pltpu

_INV_SQRT2 = 0.7071067811865476       # 1/sqrt(2) (exact erf GELU)
_SQRT_2_OVER_PI = 0.7978845608028654  # sqrt(2/pi) (tanh GELU)
_LN_EPS = 1e-5                        # nn.LayerNorm default


def _round_up(v, m):
    return ((v + m - 1) // m) * m


def _vmem_capacity_bytes():
    try:
        info = pltpu.get_tpu_info()
        cap = int(getattr(info, "vmem_capacity_bytes", 0) or 0)
        if cap > 0:
            return cap
    except Exception:
        pass
    return 128 * 1024 * 1024  # conservative default (v5e/v6e)


def _gelu(h, approx):
    if approx:
        # tanh approximation -> EUP, frees the VALU next to the MXU on v6e/v7x.
        return 0.5 * h * (1.0 + jnp.tanh(_SQRT_2_OVER_PI * (h + 0.044715 * h * h * h)))
    # exact erf GELU (nn.GELU default)
    return 0.5 * h * (1.0 + jax.lax.erf(h * _INV_SQRT2))


def _layernorm_f32(x, gamma, beta):
    mean = jnp.mean(x, axis=-1, keepdims=True)
    xc = x - mean
    var = jnp.mean(xc * xc, axis=-1, keepdims=True)
    inv = jax.lax.rsqrt(var + _LN_EPS)
    return xc * inv * gamma + beta


def _resident_kernel(x_ref, g_ref, beta_ref, w1_ref, b1_ref, w2_ref, b2_ref, o_ref,
                     *, approx_gelu):
    # Weights fully resident in VMEM; no accumulator scratch, single fused pass per row tile.
    x = x_ref[...].astype(jnp.float32)
    xn = _layernorm_f32(x, g_ref[...].astype(jnp.float32), beta_ref[...].astype(jnp.float32))
    h = jnp.dot(xn.astype(w1_ref.dtype), w1_ref[...],
                preferred_element_type=jnp.float32) + b1_ref[...].astype(jnp.float32)
    h = _gelu(h, approx_gelu)
    # Dropout with drop_prob=0.0 is the identity (eval semantics) -> omitted.
    # TODO(synk): stochastic dropout (pltpu.prng_*) not wired in; drop_prob defaults to 0.0.
    y = jnp.dot(h.astype(w2_ref.dtype), w2_ref[...], preferred_element_type=jnp.float32)
    o_ref[...] = (y + b2_ref[...].astype(jnp.float32) + x).astype(o_ref.dtype)


def _streamed_kernel(x_ref, g_ref, beta_ref, w1_ref, b1_ref, w2_ref, b2_ref, o_ref,
                     xn_ref, acc_ref, *, approx_gelu):
    # Grid = (row_tiles, f_tiles); f is the inner reduction-like axis.
    f = pl.program_id(1)
    nf = pl.num_programs(1)

    @pl.when(f == 0)
    def _():
        # LayerNorm computed once per row tile and cached in compute dtype; accumulator
        # seeded with the residual and the final bias.
        x = x_ref[...].astype(jnp.float32)
        xn = _layernorm_f32(x, g_ref[...].astype(jnp.float32),
                            beta_ref[...].astype(jnp.float32))
        xn_ref[...] = xn.astype(xn_ref.dtype)
        acc_ref[...] = x + b2_ref[...].astype(jnp.float32)

    # lin1 (this F slice) + GELU.
    h = jnp.dot(xn_ref[...], w1_ref[...],
                preferred_element_type=jnp.float32) + b1_ref[...].astype(jnp.float32)
    h = _gelu(h, approx_gelu)

    # lin2 partial product, accumulated in f32.
    acc_ref[...] += jnp.dot(h.astype(w2_ref.dtype), w2_ref[...],
                            preferred_element_type=jnp.float32)

    @pl.when(f == nf - 1)
    def _():
        o_ref[...] = acc_ref[...].astype(o_ref.dtype)


def prenorm_ff(x, gamma, beta, w1, b1, w2, b2, *, tm=None, tf=None,
               compute_dtype=None, approx_gelu=False, weight_buffers=2,
               vmem_limit_bytes=None):
    """x: (B, S, D). Returns (B, S, D). Forward of PreNormFF (eval semantics, drop_prob=0)."""
    B, S, D = x.shape
    F = w1.shape[1]
    N = B * S

    compute_dtype = jnp.dtype(compute_dtype) if compute_dtype is not None else jnp.dtype(w1.dtype)
    w1c = w1.astype(compute_dtype)
    w2c = w2.astype(compute_dtype)

    xb = jnp.dtype(x.dtype).itemsize
    wb = compute_dtype.itemsize

    # Generation-aware VMEM plan.
    cap = _vmem_capacity_bytes()           # 64 MiB on v7x, 128 MiB on v5e/v6e
    budget = int(0.8 * cap)                # never ask for more than ~80% of physical VMEM

    w_bytes = (2 * D * F + F) * wb
    if tf is not None:
        resident = tf >= F
    else:
        # ~20 MiB threshold on v7x, ~41 MiB on v5e/v6e.
        resident = w_bytes <= int(0.32 * cap)

    if resident:
        tf_eff = F
        if tm is None:
            tm = 256
        tm = max(8, min(_round_up(tm, 8), _round_up(N, 8)))
    else:
        if tm is None:
            # Weight-streaming roofline: bigger tm on high-VMEM parts (v5e/v6e), 512 on v7x.
            tm = 1024 if cap >= 96 * 2**20 else (512 if cap >= 48 * 2**20 else 256)
        tm = max(8, min(_round_up(tm, 8), _round_up(N, 8)))
        if tf is not None:
            tf_eff = min(_round_up(tf, 128), F)
        else:
            # Largest multiple of 256 such that the streamed plan fits under the budget;
            # shrink tm if even tf=256 doesn't fit.
            while True:
                fixed = (4 * tm * D * xb       # x + out tiles, double-buffered
                         + tm * D * 4          # f32 accumulator scratch
                         + tm * D * wb         # cached LayerNorm output scratch
                         + 4 * D * 4)          # gamma/beta/b2
                per_tf = weight_buffers * (2 * D + 1) * wb + tm * (4 + wb)  # W slices + h temps
                avail = budget - fixed
                tf_eff = (avail // per_tf) // 256 * 256 if avail > 0 else 0
                if tf_eff >= 256 or tm <= 256:
                    break
                tm = max(256, tm // 2)
            tf_eff = int(max(128, min(tf_eff, F)))
        if tf_eff >= F:
            resident = True
            tf_eff = F

    # Ragged hidden dim: zero-pad F. GELU(0)=0 and the padded W2 rows are zero, so the
    # padded hidden units contribute nothing.
    F_pad = F if resident else _round_up(F, tf_eff)
    nf = 1 if resident else F_pad // tf_eff

    b1c = b1
    if F_pad != F:
        w1c = jnp.pad(w1c, ((0, 0), (0, F_pad - F)))
        b1c = jnp.pad(b1, (0, F_pad - F))
        w2c = jnp.pad(w2c, ((0, F_pad - F), (0, 0)))

    # Row padding so arbitrary N works (padded rows are sliced off; zero rows are NaN-free).
    n_pad = _round_up(N, tm)
    x2 = x.reshape(N, D)
    if n_pad != N:
        x2 = jnp.pad(x2, ((0, n_pad - N), (0, 0)))

    g2 = gamma.reshape(1, D)
    bt2 = beta.reshape(1, D)
    b1_2 = b1c.reshape(1, F_pad)
    b2_2 = b2.reshape(1, D)

    const_mode = pl.Buffered(1)  # constant-index params only need a single VMEM buffer

    if vmem_limit_bytes is None:
        if resident:
            est = (4 * tm * D * xb
                   + (2 * D * F_pad + F_pad) * wb     # resident weights (single-buffered)
                   + 4 * D * 4
                   + tm * F_pad * (4 + wb)            # h f32 + cast temporaries
                   + tm * D * (4 + wb))               # xn temporaries
        else:
            est = (4 * tm * D * xb
                   + weight_buffers * (2 * D * tf_eff + tf_eff) * wb
                   + 4 * D * 4
                   + tm * D * (4 + wb)                # acc + xn cache scratch
                   + tm * tf_eff * (4 + wb))          # h temporaries
        vmem_limit_bytes = max(int(1.25 * est), 32 * 1024 * 1024)
    vmem_limit_bytes = int(min(vmem_limit_bytes, budget))

    out_shape = jax.ShapeDtypeStruct((n_pad, D), x.dtype)

    if resident:
        kernel = functools.partial(_resident_kernel, approx_gelu=approx_gelu)
        grid_spec = pltpu.PrefetchScalarGridSpec(
            num_scalar_prefetch=0,
            grid=(n_pad // tm,),
            in_specs=[
                pl.BlockSpec((tm, D), lambda i: (i, 0)),                                   # x rows
                pl.BlockSpec((1, D), lambda i: (0, 0), pipeline_mode=const_mode),          # gamma
                pl.BlockSpec((1, D), lambda i: (0, 0), pipeline_mode=const_mode),          # beta
                pl.BlockSpec((D, F_pad), lambda i: (0, 0), pipeline_mode=const_mode),      # W1
                pl.BlockSpec((1, F_pad), lambda i: (0, 0), pipeline_mode=const_mode),      # b1
                pl.BlockSpec((F_pad, D), lambda i: (0, 0), pipeline_mode=const_mode),      # W2
                pl.BlockSpec((1, D), lambda i: (0, 0), pipeline_mode=const_mode),          # b2
            ],
            out_specs=pl.BlockSpec((tm, D), lambda i: (i, 0)),
        )
        dims = ("parallel",)
    else:
        kernel = functools.partial(_streamed_kernel, approx_gelu=approx_gelu)
        w_mode = None if weight_buffers == 2 else pl.Buffered(weight_buffers)
        grid_spec = pltpu.PrefetchScalarGridSpec(
            num_scalar_prefetch=0,
            grid=(n_pad // tm, nf),
            in_specs=[
                pl.BlockSpec((tm, D), lambda i, f: (i, 0)),                                # x rows
                pl.BlockSpec((1, D), lambda i, f: (0, 0), pipeline_mode=const_mode),       # gamma
                pl.BlockSpec((1, D), lambda i, f: (0, 0), pipeline_mode=const_mode),       # beta
                pl.BlockSpec((D, tf_eff), lambda i, f: (0, f), pipeline_mode=w_mode),      # W1 slice
                pl.BlockSpec((1, tf_eff), lambda i, f: (0, f), pipeline_mode=w_mode),      # b1 slice
                pl.BlockSpec((tf_eff, D), lambda i, f: (f, 0), pipeline_mode=w_mode),      # W2 slice
                pl.BlockSpec((1, D), lambda i, f: (0, 0), pipeline_mode=const_mode),       # b2
            ],
            out_specs=pl.BlockSpec((tm, D), lambda i, f: (i, 0)),
            scratch_shapes=[
                pltpu.VMEM((tm, D), compute_dtype),   # cached LayerNorm output (per row tile)
                pltpu.VMEM((tm, D), jnp.float32),     # f32 accumulator (residual + b2 + partials)
            ],
        )
        dims = ("parallel", "arbitrary")

    out = pl.pallas_call(
        kernel,
        out_shape=out_shape,
        grid_spec=grid_spec,
        compiler_params=pltpu.CompilerParams(
            dimension_semantics=dims,
            vmem_limit_bytes=vmem_limit_bytes,
        ),
    )(x2, g2, bt2, w1c, b1_2, w2c, b2_2)

    if n_pad != N:
        out = out[:N]
    return out.reshape(B, S, D)


def prenorm_ff_ref(x, gamma, beta, w1, b1, w2, b2):
    xf = x.astype(jnp.float32)
    mean = jnp.mean(xf, axis=-1, keepdims=True)
    var = jnp.mean((xf - mean) ** 2, axis=-1, keepdims=True)
    xn = (xf - mean) * jax.lax.rsqrt(var + _LN_EPS) * gamma + beta
    h = xn @ w1 + b1
    h = 0.5 * h * (1.0 + jax.lax.erf(h * _INV_SQRT2))
    y = h @ w2 + b2
    return (y + xf).astype(x.dtype)


def _make_params(key, D, F):
    k_w1, k_b1, k_w2, k_b2 = jax.random.split(key, 4)
    gamma = jnp.ones((D,), jnp.float32)
    beta = jnp.zeros((D,), jnp.float32)
    lim1 = 1.0 / jnp.sqrt(D)
    lim2 = 1.0 / jnp.sqrt(F)
    w1 = jax.random.uniform(k_w1, (D, F), jnp.float32, -lim1, lim1)
    b1 = jax.random.uniform(k_b1, (F,), jnp.float32, -lim1, lim1)
    w2 = jax.random.uniform(k_w2, (F, D), jnp.float32, -lim2, lim2)
    b2 = jax.random.uniform(k_b2, (D,), jnp.float32, -lim2, lim2)
    return gamma, beta, w1, b1, w2, b2


if __name__ == "__main__":
    key = jax.random.PRNGKey(0)
    k1, k2, k3 = jax.random.split(key, 3)

    # Case 1: module-default small shapes (feedforward_dims = 4 * in_dims), resident fast path.
    B, S, D = 2, 8, 32
    F = 4 * D
    x = jax.random.normal(k1, (B, S, D), dtype=jnp.float32)
    params = _make_params(k2, D, F)
    out = jax.block_until_ready(prenorm_ff(x, *params))
    ref = prenorm_ff_ref(x, *params)
    assert out.shape == (B, S, D)
    assert jnp.allclose(out, ref, atol=1e-4, rtol=1e-4)

    # Case 2: row count not divisible by the tile (padding) + streamed-weight paths.
    B2, S2, D2 = 2, 37, 128
    F2 = 4 * D2
    x2 = jax.random.normal(k3, (B2, S2, D2), dtype=jnp.float32)
    params2 = _make_params(k2, D2, F2)
    ref2 = prenorm_ff_ref(x2, *params2)

    out2 = jax.block_until_ready(prenorm_ff(x2, *params2))                  # resident + row pad
    assert jnp.allclose(out2, ref2, atol=1e-4, rtol=1e-4)

    out3 = jax.block_until_ready(prenorm_ff(x2, *params2, tf=F2 // 2))      # streamed, nf=2
    assert jnp.allclose(out3, ref2, atol=1e-4, rtol=1e-4)

    out4 = jax.block_until_ready(prenorm_ff(x2, *params2, tf=384))          # streamed, ragged F (padded)
    assert jnp.allclose(out4, ref2, atol=1e-4, rtol=1e-4)

    # bf16 MXU path (f32 accumulation, f32 LN/GELU) -- looser tolerance vs the pure-f32 reference.
    out5 = jax.block_until_ready(prenorm_ff(x2, *params2, compute_dtype=jnp.bfloat16))
    assert jnp.allclose(out5, ref2, atol=3e-2, rtol=3e-2)

    # tanh-approximate GELU (EUP path) -- close but not bit-identical to exact erf GELU.
    out6 = jax.block_until_ready(prenorm_ff(x2, *params2, approx_gelu=True))
    assert jnp.allclose(out6, ref2, atol=2e-2, rtol=2e-2)

    print("KERNEL_OK")
</pallas_src>

<mosaic_0001>
module attributes {stable_mosaic.version = 11 : i64} {
  func.func @_resident_kernel(%arg0: i32, %arg1: memref<16x32xf32, #tpu.memory_space<vmem>>, %arg2: memref<1x32xf32, #tpu.memory_space<vmem>>, %arg3: memref<1x32xf32, #tpu.memory_space<vmem>>, %arg4: memref<32x128xf32, #tpu.memory_space<vmem>>, %arg5: memref<1x128xf32, #tpu.memory_space<vmem>>, %arg6: memref<128x32xf32, #tpu.memory_space<vmem>>, %arg7: memref<1x32xf32, #tpu.memory_space<vmem>>, %arg8: memref<16x32xf32, #tpu.memory_space<vmem>>) attributes {dimension_semantics = [#tpu.dimension_semantics<parallel>], iteration_bounds = array<i64: 1>, scalar_prefetch = 0 : i64, scratch_operands = 0 : i64, tpu.core_type = #tpu.core_type<tc>, window_params = [{transform_indices = @transform_0, window_bounds = array<i64: 16, 32>}, {pipeline_mode = #tpu.pipeline_mode<synchronous>, transform_indices = @transform_1, window_bounds = array<i64: 1, 32>}, {pipeline_mode = #tpu.pipeline_mode<synchronous>, transform_indices = @transform_2, window_bounds = array<i64: 1, 32>}, {pipeline_mode = #tpu.pipeline_mode<synchronous>, transform_indices = @transform_3, window_bounds = array<i64: 32, 128>}, {pipeline_mode = #tpu.pipeline_mode<synchronous>, transform_indices = @transform_4, window_bounds = array<i64: 1, 128>}, {pipeline_mode = #tpu.pipeline_mode<synchronous>, transform_indices = @transform_5, window_bounds = array<i64: 128, 32>}, {pipeline_mode = #tpu.pipeline_mode<synchronous>, transform_indices = @transform_6, window_bounds = array<i64: 1, 32>}, {transform_indices = @transform_7, window_bounds = array<i64: 16, 32>}]} {
    %c0 = arith.constant 0 : index
    %c0_0 = arith.constant 0 : index
    %0 = vector.load %arg1[%c0, %c0_0] : memref<16x32xf32, #tpu.memory_space<vmem>>, vector<16x32xf32>
    %c0_1 = arith.constant 0 : index
    %c0_2 = arith.constant 0 : index
    %1 = vector.load %arg2[%c0_1, %c0_2] : memref<1x32xf32, #tpu.memory_space<vmem>>, vector<1x32xf32>
    %c0_3 = arith.constant 0 : index
    %c0_4 = arith.constant 0 : index
    %2 = vector.load %arg3[%c0_3, %c0_4] : memref<1x32xf32, #tpu.memory_space<vmem>>, vector<1x32xf32>
    %cst = arith.constant dense<0.000000e+00> : vector<16xf32>
    %3 = vector.multi_reduction <add>, %0, %cst [1] : vector<16x32xf32> to vector<16xf32>
    %4 = vector.shape_cast %3 : vector<16xf32> to vector<16x1xf32>
    %cst_5 = arith.constant 3.200000e+01 : f32
    %5 = vector.broadcast %cst_5 : f32 to vector<16x1xf32>
    %6 = arith.divf %4, %5 : vector<16x1xf32>
    %7 = vector.broadcast %6 : vector<16x1xf32> to vector<16x32xf32>
    %8 = arith.subf %0, %7 : vector<16x32xf32>
    %9 = arith.mulf %8, %8 : vector<16x32xf32>
    %cst_6 = arith.constant dense<0.000000e+00> : vector<16xf32>
    %10 = vector.multi_reduction <add>, %9, %cst_6 [1] : vector<16x32xf32> to vector<16xf32>
    %11 = vector.shape_cast %10 : vector<16xf32> to vector<16x1xf32>
    %cst_7 = arith.constant 3.200000e+01 : f32
    %12 = vector.broadcast %cst_7 : f32 to vector<16x1xf32>
    %13 = arith.divf %11, %12 : vector<16x1xf32>
    %cst_8 = arith.constant 9.99999974E-6 : f32
    %14 = vector.broadcast %cst_8 : f32 to vector<16x1xf32>
    %15 = arith.addf %13, %14 : vector<16x1xf32>
    %16 = math.rsqrt %15 : vector<16x1xf32>
    %17 = vector.broadcast %16 : vector<16x1xf32> to vector<16x32xf32>
    %18 = arith.mulf %8, %17 : vector<16x32xf32>
    %19 = vector.broadcast %1 : vector<1x32xf32> to vector<16x32xf32>
    %20 = arith.mulf %18, %19 : vector<16x32xf32>
    %21 = vector.broadcast %2 : vector<1x32xf32> to vector<16x32xf32>
    %22 = arith.addf %20, %21 : vector<16x32xf32>
    %c0_9 = arith.constant 0 : index
    %c0_10 = arith.constant 0 : index
    %23 = vector.load %arg4[%c0_9, %c0_10] : memref<32x128xf32, #tpu.memory_space<vmem>>, vector<32x128xf32>
    %cst_11 = arith.constant dense<0.000000e+00> : vector<16x128xf32>
    %24 = tpu.matmul %22, %23, %cst_11 {dimension_numbers = #tpu.dot_dimension_numbers<[1], [0], [0], [1], [0, 0, 1, 1], [], []>} : vector<16x32xf32>, vector<32x128xf32>, vector<16x128xf32> -> vector<16x128xf32>
    %c0_12 = arith.constant 0 : index
    %c0_13 = arith.constant 0 : index
    %25 = vector.load %arg5[%c0_12, %c0_13] : memref<1x128xf32, #tpu.memory_space<vmem>>, vector<1x128xf32>
    %26 = vector.broadcast %25 : vector<1x128xf32> to vector<16x128xf32>
    %27 = arith.addf %24, %26 : vector<16x128xf32>
    %cst_14 = arith.constant 5.000000e-01 : f32
    %28 = vector.broadcast %cst_14 : f32 to vector<16x128xf32>
    %29 = arith.mulf %28, %27 : vector<16x128xf32>
    %cst_15 = arith.constant 0.707106769 : f32
    %30 = vector.broadcast %cst_15 : f32 to vector<16x128xf32>
    %31 = arith.mulf %27, %30 : vector<16x128xf32>
    %32 = math.erf %31 : vector<16x128xf32>
    %cst_16 = arith.constant 1.000000e+00 : f32
    %33 = vector.broadcast %cst_16 : f32 to vector<16x128xf32>
    %34 = arith.addf %33, %32 : vector<16x128xf32>
    %35 = arith.mulf %29, %34 : vector<16x128xf32>
    %c0_17 = arith.constant 0 : index
    %c0_18 = arith.constant 0 : index
    %36 = vector.load %arg6[%c0_17, %c0_18] : memref<128x32xf32, #tpu.memory_space<vmem>>, vector<128x32xf32>
    %cst_19 = arith.constant dense<0.000000e+00> : vector<16x32xf32>
    %37 = tpu.matmul %35, %36, %cst_19 {dimension_numbers = #tpu.dot_dimension_numbers<[1], [0], [0], [1], [0, 0, 1, 1], [], []>} : vector<16x128xf32>, vector<128x32xf32>, vector<16x32xf32> -> vector<16x32xf32>
    %c0_20 = arith.constant 0 : index
    %c0_21 = arith.constant 0 : index
    %38 = vector.load %arg7[%c0_20, %c0_21] : memref<1x32xf32, #tpu.memory_space<vmem>>, vector<1x32xf32>
    %39 = vector.broadcast %38 : vector<1x32xf32> to vector<16x32xf32>
    %40 = arith.addf %37, %39 : vector<16x32xf32>
    %41 = arith.addf %40, %0 : vector<16x32xf32>
    %c0_22 = arith.constant 0 : index
    %c0_23 = arith.constant 0 : index
    %42 = vector.load %arg8[%c0_22, %c0_23] : memref<16x32xf32, #tpu.memory_space<vmem>>, vector<16x32xf32>
    tpu.vector_store %arg8[%c0_22, %c0_23], %41 {strides = array<i32>} : memref<16x32xf32, #tpu.memory_space<vmem>>, vector<16x32xf32>,
    return
  }
  func.func @transform_0(%arg0: i32) -> (i32, i32) {
    %c0_i32 = arith.constant 0 : i32
    %c0_i32_0 = arith.constant 0 : i32
    return %arg0, %c0_i32 : i32, i32
  }
  func.func @transform_1(%arg0: i32) -> (i32, i32) {
    %c0_i32 = arith.constant 0 : i32
    %c0_i32_0 = arith.constant 0 : i32
    %c0_i32_1 = arith.constant 0 : i32
    return %c0_i32, %c0_i32_0 : i32, i32
  }
  func.func @transform_2(%arg0: i32) -> (i32, i32) {
    %c0_i32 = arith.constant 0 : i32
    %c0_i32_0 = arith.constant 0 : i32
    %c0_i32_1 = arith.constant 0 : i32
    return %c0_i32, %c0_i32_0 : i32, i32
  }
  func.func @transform_3(%arg0: i32) -> (i32, i32) {
    %c0_i32 = arith.constant 0 : i32
    %c0_i32_0 = arith.constant 0 : i32
    %c0_i32_1 = arith.constant 0 : i32
    return %c0_i32, %c0_i32_0 : i32, i32
  }
  func.func @transform_4(%arg0: i32) -> (i32, i32) {
    %c0_i32 = arith.constant 0 : i32
    %c0_i32_0 = arith.constant 0 : i32
    %c0_i32_1 = arith.constant 0 : i32
    return %c0_i32, %c0_i32_0 : i32, i32
  }
  func.func @transform_5(%arg0: i32) -> (i32, i32) {
    %c0_i32 = arith.constant 0 : i32
    %c0_i32_0 = arith.constant 0 : i32
    %c0_i32_1 = arith.constant 0 : i32
    return %c0_i32, %c0_i32_0 : i32, i32
  }
  func.func @transform_6(%arg0: i32) -> (i32, i32) {
    %c0_i32 = arith.constant 0 : i32
    %c0_i32_0 = arith.constant 0 : i32
    %c0_i32_1 = arith.constant 0 : i32
    return %c0_i32, %c0_i32_0 : i32, i32
  }
  func.func @transform_7(%arg0: i32) -> (i32, i32) {
    %c0_i32 = arith.constant 0 : i32
    %c0_i32_0 = arith.constant 0 : i32
    return %arg0, %c0_i32 : i32, i32
  }
}

</mosaic_0001>

<llo_original>
// kernel: tpu_custom_call.1
$region0: #{tpu_custom_call.1}
  #allocation0 [shape = 'u32[]', space=smem, size = 0x4, offset = 0x4, fixed_abs, tag = 'smem constant byte address 0x4 - core index']
  #allocation1 [shape = 'u32[144,128]{1,0:T(1,128)}', space=vmem, size = 0x12000, scoped, tag = 'internal scratch']
  %s0 = inlined_call_operand.vmem [shape: f32[16,32], index: 0, kind: input, shape index: {}]
  %s1 = inlined_call_operand.vmem [shape: f32[1,32], index: 1, kind: input, shape index: {}]
  %s2 = inlined_call_operand.vmem [shape: f32[1,32], index: 2, kind: input, shape index: {}]
  %s3 = inlined_call_operand.vmem [shape: f32[32,128], index: 3, kind: input, shape index: {}]
  %s4 = inlined_call_operand.vmem [shape: f32[1,128], index: 4, kind: input, shape index: {}]
  %s5 = inlined_call_operand.vmem [shape: f32[128,32], index: 5, kind: input, shape index: {}]
  %s6 = inlined_call_operand.vmem [shape: f32[1,32], index: 6, kind: input, shape index: {}]
  %s7 = inlined_call_operand.hbm [shape: f32[16,32], index: 7, kind: output, shape index: {}]
  %s8 = sld [smem:[#allocation0]]
  $region38: #{tpu_custom_call.1} parent=0
    _
  %s10 = ssub.s32 1, %s8
  %s11 = scalar_select 0, %s10, %s8
  $region1: #{tpu_custom_call.1} parent=0
    #allocation2 [shape = 'u8[8192]{0}', space=vmem, size = 0x2000, scoped, tag = 'output window, operand 0, single buffered']
    #allocation3 [shape = 's32[1]{0}', space=sflag, size = 0x4, scoped, tag = 'scoped memory for tpu_custom_call.1']
    %12 = vsyncpa [#allocation3], 0
    // Predicated region
    $region2: #{tpu_custom_call.1} parent=1 // pred_check
      _
    $region3: #{tpu_custom_call.1} parent=1 // pred_check_branch
      %14 = sbr.rel (0) target = $region5
    $region4: #{tpu_custom_call.1} parent=1 // pred_region
      _
    $region5: #{tpu_custom_call.1} parent=1 // pred_fallthru
      _
    // Predicated region
    $region6: #{tpu_custom_call.1} parent=1 // pred_check
      _
    $region7: #{tpu_custom_call.1} parent=1 // pred_check_branch
      %16 = sbr.rel (0) target = $region9
    $region8: #{tpu_custom_call.1} parent=1 // pred_region
      _
    $region9: #{tpu_custom_call.1} parent=1 // pred_fallthru
      _
    // Predicated region
    $region10: #{tpu_custom_call.1} parent=1 // pred_check
      _
    $region11: #{tpu_custom_call.1} parent=1 // pred_check_branch
      %18 = sbr.rel (0) target = $region13
    $region12: #{tpu_custom_call.1} parent=1 // pred_region
      _
    $region13: #{tpu_custom_call.1} parent=1 // pred_fallthru
      _
    // Predicated region
    $region14: #{tpu_custom_call.1} parent=1 // pred_check
      _
    $region15: #{tpu_custom_call.1} parent=1 // pred_check_branch
      %20 = sbr.rel (0) target = $region17
    $region16: #{tpu_custom_call.1} parent=1 // pred_region
      _
    $region17: #{tpu_custom_call.1} parent=1 // pred_fallthru
      _
    // Predicated region
    $region18: #{tpu_custom_call.1} parent=1 // pred_check
      _
    $region19: #{tpu_custom_call.1} parent=1 // pred_check_branch
      %22 = sbr.rel (0) target = $region21
    $region20: #{tpu_custom_call.1} parent=1 // pred_region
      _
    $region21: #{tpu_custom_call.1} parent=1 // pred_fallthru
      _
    // Predicated region
    $region22: #{tpu_custom_call.1} parent=1 // pred_check
      _
    $region23: #{tpu_custom_call.1} parent=1 // pred_check_branch
      %24 = sbr.rel (0) target = $region25
    $region24: #{tpu_custom_call.1} parent=1 // pred_region
      _
    $region25: #{tpu_custom_call.1} parent=1 // pred_fallthru
      _
    // Predicated region
    $region26: #{tpu_custom_call.1} parent=1 // pred_check
      _
    $region27: #{tpu_custom_call.1} parent=1 // pred_check_branch
      %26 = sbr.rel (0) target = $region29
    $region28: #{tpu_custom_call.1} parent=1 // pred_region
      _
    $region29: #{tpu_custom_call.1} parent=1 // pred_fallthru
      _
    %v27 = vld [vmem:[%s0] sm:$0xff]
    %v28 = vld [vmem:[%s0 + $0x8] sm:$0xff]
    %v29 = vld [vmem:[%s1] sm:$0x1]
    %v30 = vld [vmem:[%s2] sm:$0x1]
    %vm31 = vcmask 261120
    %v32 = vsel %vm31, %v27, 0.0
    %33 = vadd.xlane.f32.xlu0 %v32
    %v34 = vpop.xlane.xlu0 %33
    %v35 = vsel %vm31, %v28, 0.0
    %36 = vadd.xlane.f32.xlu0 %v35
    %v37 = vpop.xlane.xlu0 %36
    %v38 = vrcp.pop 32.0
    %v39 = vmul.f32 %v34, %v38
    %v40 = vmul.f32 %v37, %v38
    %v41 = vsub.f32 %v27, %v39
    %v42 = vsub.f32 %v28, %v40
    %v43 = vmul.f32 %v41, %v41
    %v44 = vmul.f32 %v42, %v42
    %v45 = vsel %vm31, %v43, 0.0
    %46 = vadd.xlane.f32.xlu0 %v45
    %v47 = vpop.xlane.xlu0 %46
    %v48 = vsel %vm31, %v44, 0.0
    %49 = vadd.xlane.f32.xlu0 %v48
    %v50 = vpop.xlane.xlu0 %49
    %v51 = vmul.f32 %v47, %v38
    %v52 = vmul.f32 %v50, %v38
    %v53 = vadd.f32 %v51, 1e-05
    %v54 = vadd.f32 %v52, 1e-05
    %v55 = vrsqrt.pop %v53
    %v56 = vrsqrt.pop %v54
    %v57 = vmul.f32 %v41, %v55
    %v58 = vmul.f32 %v42, %v56
    %v60 = vlaneseq
    %v61 = vshrl.u32 %v60, 7
    %v62 = vsub.s32 0, %v61
    %v63 = vrot.slane %v29, %v62
    %v65 = vmul.f32 %v57, %v63
    %v66 = vmul.f32 %v58, %v63
    %v68 = vlaneseq
    %v69 = vshrl.u32 %v68, 7
    %v70 = vsub.s32 0, %v69
    %v71 = vrot.slane %v30, %v70
    %v73 = vadd.f32 %v65, %v71
    %v74 = vadd.f32 %v66, %v71
    %v75 = vld [vmem:[%s3] sm:$0xff]
    %v76 = vld [vmem:[%s3 + $0x8] sm:$0xff]
    %v77 = vld [vmem:[%s3 + $0x10] sm:$0xff]
    %v78 = vld [vmem:[%s3 + $0x18] sm:$0xff]
    %v79 = vld [vmem:[%s4] sm:$0x1]
    %v81 = vlaneseq
    %v82 = vshrl.u32 %v81, 7
    %v83 = vsub.s32 0, %v82
    %v84 = vrot.slane %v79, %v83
    %v87 = vsel %vm31, %v73, 0
    %v90 = vsel %vm31, %v74, 0
    %92 = vmatprep.subr.mxu0 0.0
    %93 = vmatpush1.msra.mxu0 0.0
    %94 = vmatprep.subr.mxu0 0.0
    %95 = vmatpush1.msra.mxu0 0.0
    %96 = vmatprep.subr.mxu0 0.0
    %97 = vmatpush1.msra.mxu0 0.0
    %98 = vmatprep.subr.mxu0 0.0
    %99 = vmatpush1.msra.mxu0 0.0
    %100 = vmatprep.subr.mxu0 0.0
    %101 = vmatpush1.msra.mxu0 0.0
    %102 = vmatprep.subr.mxu0 0.0
    %103 = vmatpush1.msra.mxu0 0.0
    %104 = vmatprep.subr.mxu0 0.0
    %105 = vmatpush1.msra.mxu0 0.0
    %106 = vmatprep.subr.mxu0 0.0
    %107 = vmatpush1.msra.mxu0 0.0
    %108 = vmatprep.subr.mxu0 0.0
    %109 = vmatpush1.msra.mxu0 0.0
    %110 = vmatprep.subr.mxu0 0.0
    %111 = vmatpush1.msra.mxu0 0.0
    %112 = vmatprep.subr.mxu0 0.0
    %113 = vmatpush1.msra.mxu0 0.0
    %114 = vmatprep.subr.mxu0 0.0
    %115 = vmatpush1.msra.mxu0 0.0
    %116 = vmatprep.subr.mxu0 0.0
    %117 = vmatpush1.msra.mxu0 %v78
    %118 = vmatprep.subr.mxu0 0.0
    %119 = vmatpush1.msra.mxu0 %v77
    %120 = vmatprep.subr.mxu0 0.0
    %121 = vmatpush1.msra.mxu0 %v76
    %122 = vmatprep.subr.mxu0 0.0
    %123 = vmatpush1.msra.mxu0 %v75
    %124 = vmatprep.subr.mxu0 0.0
    %125 = vmatpush2.msra.mxu0 0.0
    %126 = vmatprep.subr.mxu0 0.0
    %127 = vmatpush2.msra.mxu0 0.0
    %128 = vmatprep.subr.mxu0 0.0
    %129 = vmatpush2.msra.mxu0 0.0
    %130 = vmatprep.subr.mxu0 0.0
    %131 = vmatpush2.msra.mxu0 0.0
    %132 = vmatprep.subr.mxu0 0.0
    %133 = vmatpush2.msra.mxu0 0.0
    %134 = vmatprep.subr.mxu0 0.0
    %135 = vmatpush2.msra.mxu0 0.0
    %136 = vmatprep.subr.mxu0 0.0
    %137 = vmatpush2.msra.mxu0 0.0
    %138 = vmatprep.subr.mxu0 0.0
    %139 = vmatpush2.msra.mxu0 0.0
    %140 = vmatprep.subr.mxu0 0.0
    %141 = vmatpush2.msra.mxu0 0.0
    %142 = vmatprep.subr.mxu0 0.0
    %143 = vmatpush2.msra.mxu0 0.0
    %144 = vmatprep.subr.mxu0 0.0
    %145 = vmatpush2.msra.mxu0 0.0
    %146 = vmatprep.subr.mxu0 0.0
    %147 = vmatpush2.msra.mxu0 0.0
    %148 = vmatprep.subr.mxu0 0.0
    %149 = vmatpush2.msra.mxu0 0.0
    %150 = vmatprep.subr.mxu0 0.0
    %151 = vmatpush2.msra.mxu0 0.0
    %152 = vmatprep.subr.mxu0 0.0
    %153 = vmatpush2.msra.mxu0 0.0
    %154 = vmatprep.subr.mxu0 0.0
    %155 = vmatpush2.msra.mxu0 0.0
    %156 = vmatprep.mubr.f32.mxu0 0.0
    %157 = vmatmul.mubr.f32.gmra.mxu0 %v87
    %v158 = vpop.f32.mrf.mxu0
    %v159 = vadd.f32 %v84, %v158
    %v160 = vpop.f32.mrf.mxu0
    %161 = vmatprep.mubr.f32.mxu0 0.0
    %162 = vmatmul.mubr.f32.gmra.mxu0 %v90
    %v163 = vpop.f32.mrf.mxu0
    %v164 = vadd.f32 %v84, %v163
    %v165 = vpop.f32.mrf.mxu0
    %166 = vdwg.mxu0
    %v167 = vmul.f32 %v159, 0.5
    %v168 = vmul.f32 %v164, 0.5
    %v169 = vmul.f32 %v159, 0.70710677
    %v170 = vmul.f32 %v164, 0.70710677
    %v171 = verf.f32.pop %v169
    %v172 = verf.f32.pop %v170
    %v173 = vadd.f32 %v171, 1.0
    %v174 = vadd.f32 %v172, 1.0
    %v175 = vmul.f32 %v167, %v173
    %v176 = vmul.f32 %v168, %v174
    %v177 = vld [vmem:[%s5] sm:$0xff]
    %v178 = vld [vmem:[%s5 + $0x8] sm:$0xff]
    %v179 = vld [vmem:[%s5 + $0x10] sm:$0xff]
    %v180 = vld [vmem:[%s5 + $0x18] sm:$0xff]
    %v181 = vld [vmem:[%s5 + $0x20] sm:$0xff]
    %v182 = vld [vmem:[%s5 + $0x28] sm:$0xff]
    %v183 = vld [vmem:[%s5 + $0x30] sm:$0xff]
    %v184 = vld [vmem:[%s5 + $0x38] sm:$0xff]
    %v185 = vld [vmem:[%s5 + $0x40] sm:$0xff]
    %v186 = vld [vmem:[%s5 + $0x48] sm:$0xff]
    %v187 = vld [vmem:[%s5 + $0x50] sm:$0xff]
    %v188 = vld [vmem:[%s5 + $0x58] sm:$0xff]
    %v189 = vld [vmem:[%s5 + $0x60] sm:$0xff]
    %v190 = vld [vmem:[%s5 + $0x68] sm:$0xff]
    %v191 = vld [vmem:[%s5 + $0x70] sm:$0xff]
    %v192 = vld [vmem:[%s5 + $0x78] sm:$0xff]
    %v193 = vld [vmem:[%s6] sm:$0x1]
    %v195 = vlaneseq
    %v196 = vshrl.u32 %v195, 7
    %v197 = vsub.s32 0, %v196
    %v198 = vrot.slane %v193, %v197
    %200 = vmatprep.subr.mxu0 0.0
    %201 = vmatpush1.msra.mxu0 %v192
    %202 = vmatprep.subr.mxu0 0.0
    %203 = vmatpush1.msra.mxu0 %v191
    %204 = vmatprep.subr.mxu0 0.0
    %205 = vmatpush1.msra.mxu0 %v190
    %206 = vmatprep.subr.mxu0 0.0
    %207 = vmatpush1.msra.mxu0 %v189
    %208 = vmatprep.subr.mxu0 0.0
    %209 = vmatpush1.msra.mxu0 %v188
    %210 = vmatprep.subr.mxu0 0.0
    %211 = vmatpush1.msra.mxu0 %v187
    %212 = vmatprep.subr.mxu0 0.0
    %213 = vmatpush1.msra.mxu0 %v186
    %214 = vmatprep.subr.mxu0 0.0
    %215 = vmatpush1.msra.mxu0 %v185
    %216 = vmatprep.subr.mxu0 0.0
    %217 = vmatpush1.msra.mxu0 %v184
    %218 = vmatprep.subr.mxu0 0.0
    %219 = vmatpush1.msra.mxu0 %v183
    %220 = vmatprep.subr.mxu0 0.0
    %221 = vmatpush1.msra.mxu0 %v182
    %222 = vmatprep.subr.mxu0 0.0
    %223 = vmatpush1.msra.mxu0 %v181
    %224 = vmatprep.subr.mxu0 0.0
    %225 = vmatpush1.msra.mxu0 %v180
    %226 = vmatprep.subr.mxu0 0.0
    %227 = vmatpush1.msra.mxu0 %v179
    %228 = vmatprep.subr.mxu0 0.0
    %229 = vmatpush1.msra.mxu0 %v178
    %230 = vmatprep.subr.mxu0 0.0
    %231 = vmatpush1.msra.mxu0 %v177
    %232 = vmatprep.subr.mxu0 0.0
    %233 = vmatpush2.msra.mxu0 0.0
    %234 = vmatprep.subr.mxu0 0.0
    %235 = vmatpush2.msra.mxu0 0.0
    %236 = vmatprep.subr.mxu0 0.0
    %237 = vmatpush2.msra.mxu0 0.0
    %238 = vmatprep.subr.mxu0 0.0
    %239 = vmatpush2.msra.mxu0 0.0
    %240 = vmatprep.subr.mxu0 0.0
    %241 = vmatpush2.msra.mxu0 0.0
    %242 = vmatprep.subr.mxu0 0.0
    %243 = vmatpush2.msra.mxu0 0.0
    %244 = vmatprep.subr.mxu0 0.0
    %245 = vmatpush2.msra.mxu0 0.0
    %246 = vmatprep.subr.mxu0 0.0
    %247 = vmatpush2.msra.mxu0 0.0
    %248 = vmatprep.subr.mxu0 0.0
    %249 = vmatpush2.msra.mxu0 0.0
    %250 = vmatprep.subr.mxu0 0.0
    %251 = vmatpush2.msra.mxu0 0.0
    %252 = vmatprep.subr.mxu0 0.0
    %253 = vmatpush2.msra.mxu0 0.0
    %254 = vmatprep.subr.mxu0 0.0
    %255 = vmatpush2.msra.mxu0 0.0
    %256 = vmatprep.subr.mxu0 0.0
    %257 = vmatpush2.msra.mxu0 0.0
    %258 = vmatprep.subr.mxu0 0.0
    %259 = vmatpush2.msra.mxu0 0.0
    %260 = vmatprep.subr.mxu0 0.0
    %261 = vmatpush2.msra.mxu0 0.0
    %262 = vmatprep.subr.mxu0 0.0
    %263 = vmatpush2.msra.mxu0 0.0
    %264 = vmatprep.mubr.f32.mxu0 0.0
    %265 = vmatmul.mubr.f32.gmra.mxu0 %v175
    %v266 = vpop.f32.mrf.mxu0
    %v267 = vadd.f32 %v198, %v266
    %v268 = vpop.f32.mrf.mxu0
    %269 = vmatprep.mubr.f32.mxu0 0.0
    %270 = vmatmul.mubr.f32.gmra.mxu0 %v176
    %v271 = vpop.f32.mrf.mxu0
    %v272 = vadd.f32 %v198, %v271
    %v273 = vpop.f32.mrf.mxu0
    %274 = vdwg.mxu0
    %v275 = vadd.f32 %v267, %v27
    %v276 = vadd.f32 %v272, %v28
    %277 = vst.msk [vmem:[#allocation2] sm:$0xff] %vm31, %v275
    %278 = vst.msk [vmem:[#allocation2 + $0x8] sm:$0xff] %vm31, %v276
    // Predicated region
    $region30: #{tpu_custom_call.1} parent=1 // pred_check
      _
    $region31: #{tpu_custom_call.1} parent=1 // pred_check_branch
      %280 = sbr.rel (0) target = $region33
    $region32: #{tpu_custom_call.1} parent=1 // pred_region
      %s282 = ssub.s32 256, 256
      %283 = vsyncadd [#allocation3], %s282
      %s284 = sshll.u32 [#allocation2], 4
      %s285 = int_to_ptr.vmem [resolvable:$true] %s284
      %290 = dma.vmem_to_hbm [thread:$0]  %s285, 256, %s7, [#allocation3], 128, 128, 8
    $region33: #{tpu_custom_call.1} parent=1 // pred_fallthru
      _
    // Predicated region
    $region34: #{tpu_custom_call.1} parent=1 // pred_check
      _
    $region35: #{tpu_custom_call.1} parent=1 // pred_check_branch
      %292 = sbr.rel (0) target = $region37
    $region36: #{tpu_custom_call.1} parent=1 // pred_region
      %293 = dma.done [#allocation3], 256
    $region37: #{tpu_custom_call.1} parent=1 // pred_fallthru
      _
    %294 = vsyncpa [#allocation3], 1

</llo_original>
